<compile_context>
chip_gen: v7x
topology: tpu7x:2x2x1
jax: 0.10.0
libtpu: 0.0.40
codegen_flags: <defaults>
</compile_context>

<pallas_src>
import jax
import jax.numpy as jnp
from jax.experimental import pallas as pl
from jax.experimental.pallas import tpu as pltpu


def _copy_kernel(x_ref, o_ref):
    # Elementwise identity: copy the current VMEM tile.
    o_ref[...] = x_ref[...]


def _sublane_multiple(dtype):
    # Sub-32-bit dtypes pack along sublanes: f32 -> 8, bf16/f16 -> 16, int8/fp8 -> 32.
    itemsize = jnp.dtype(dtype).itemsize
    return {4: 8, 2: 16, 1: 32}.get(itemsize, 8)


def pallas_squeeze(x):
    """Equivalent of torch.Tensor.squeeze(): drop all size-1 dims."""
    squeezed_shape = tuple(d for d in x.shape if d != 1)

    # Degenerate cases: nothing for a kernel to do.
    if x.ndim == 0 or x.size == 0:
        return x.reshape(squeezed_shape)

    total = int(x.size)
    itemsize = jnp.dtype(x.dtype).itemsize
    bytes_accessed = 2 * total * itemsize
    cost = pl.CostEstimate(flops=0, transcendentals=0, bytes_accessed=bytes_accessed)

    # Pick a lane-dense last dim: largest of these 128-multiples dividing the size.
    lane = None
    for cand in (2048, 1024, 512, 256, 128):
        if total % cand == 0:
            lane = cand
            break

    if lane is None:
        # TODO(synk): pad/mask to a 128-multiple lane width when size % 128 != 0;
        # fall back to a single full-array block (correct, lane-sparse stores).
        last = x.shape[-1]
        rows = total // last
        x2 = x.reshape(rows, last)
        out2 = pl.pallas_call(
            _copy_kernel,
            out_shape=jax.ShapeDtypeStruct((rows, last), x.dtype),
            in_specs=[pl.BlockSpec((rows, last), lambda: (0, 0))],
            out_specs=pl.BlockSpec((rows, last), lambda: (0, 0)),
            input_output_aliases={0: 0},
            cost_estimate=cost,
        )(x2)
        return out2.reshape(squeezed_shape)

    rows = total // lane
    x2 = x.reshape(rows, lane)

    # ~2 MiB per block: with 2 arrays x 2 pipeline buffers this stays well under
    # the default scoped VMEM on all generations (v5e 16 MiB, v6e/v7x 32 MiB).
    sub = _sublane_multiple(x.dtype)
    target_bytes = 2 * 1024 * 1024
    tile_rows = max(sub, (target_bytes // (lane * itemsize)) // sub * sub)
    if rows <= tile_rows:
        tile_rows = rows  # single full-height block (block dim == full array dim is legal)
    grid = (pl.cdiv(rows, tile_rows),)

    out2 = pl.pallas_call(
        _copy_kernel,
        out_shape=jax.ShapeDtypeStruct((rows, lane), x.dtype),
        grid=grid,
        in_specs=[pl.BlockSpec((tile_rows, lane), lambda i: (i, 0))],
        out_specs=pl.BlockSpec((tile_rows, lane), lambda i: (i, 0)),
        input_output_aliases={0: 0},
        compiler_params=pltpu.CompilerParams(dimension_semantics=("parallel",)),
        cost_estimate=cost,
    )(x2)

    # The squeeze itself: pure metadata reshape.
    return out2.reshape(squeezed_shape)


if __name__ == "__main__":
    key = jax.random.PRNGKey(0)

    # Main test: small shape with size-1 dims, (2, 1, 16, 16) -> (2, 16, 16).
    x = jax.random.normal(key, (2, 1, 16, 16), dtype=jnp.float32)
    y = pallas_squeeze(x)
    jax.block_until_ready(y)
    y_ref = jnp.squeeze(x)
    assert y.shape == y_ref.shape == (2, 16, 16), y.shape
    assert y.dtype == x.dtype
    assert bool(jnp.allclose(y, y_ref)), "mismatch vs reference squeeze"

    # Secondary test: exercises the multi-block grid + partial last block path.
    x_big = jax.random.normal(jax.random.PRNGKey(1), (600, 1, 1024), dtype=jnp.float32)
    y_big = pallas_squeeze(x_big)
    jax.block_until_ready(y_big)
    y_big_ref = jnp.squeeze(x_big)
    assert y_big.shape == y_big_ref.shape == (600, 1024), y_big.shape
    assert bool(jnp.allclose(y_big, y_big_ref)), "mismatch vs reference squeeze (tiled)"

    print("KERNEL_OK")
</pallas_src>

<mosaic_0001>
module attributes {stable_mosaic.version = 11 : i64} {
  func.func @_copy_kernel(%arg0: i32, %arg1: memref<1x512xf32, #tpu.memory_space<vmem>>, %arg2: memref<1x512xf32, #tpu.memory_space<vmem>>) attributes {dimension_semantics = [#tpu.dimension_semantics<parallel>], iteration_bounds = array<i64: 1>, scalar_prefetch = 0 : i64, scratch_operands = 0 : i64, tpu.core_type = #tpu.core_type<tc>, window_params = [{transform_indices = @transform_0, window_bounds = array<i64: 1, 512>}, {transform_indices = @transform_1, window_bounds = array<i64: 1, 512>}]} {
    %c0 = arith.constant 0 : index
    %c0_0 = arith.constant 0 : index
    %0 = vector.load %arg1[%c0, %c0_0] : memref<1x512xf32, #tpu.memory_space<vmem>>, vector<1x512xf32>
    %c0_1 = arith.constant 0 : index
    %c0_2 = arith.constant 0 : index
    %1 = vector.load %arg2[%c0_1, %c0_2] : memref<1x512xf32, #tpu.memory_space<vmem>>, vector<1x512xf32>
    tpu.vector_store %arg2[%c0_1, %c0_2], %0 {strides = array<i32>} : memref<1x512xf32, #tpu.memory_space<vmem>>, vector<1x512xf32>,
    return
  }
  func.func @transform_0(%arg0: i32) -> (i32, i32) {
    %c0_i32 = arith.constant 0 : i32
    %c0_i32_0 = arith.constant 0 : i32
    return %arg0, %c0_i32 : i32, i32
  }
  func.func @transform_1(%arg0: i32) -> (i32, i32) {
    %c0_i32 = arith.constant 0 : i32
    %c0_i32_0 = arith.constant 0 : i32
    return %arg0, %c0_i32 : i32, i32
  }
}

</mosaic_0001>

<llo_original>
// kernel: tpu_custom_call.1
$region0: #{tpu_custom_call.1}
  #allocation0 [shape = 'u32[]', space=smem, size = 0x4, offset = 0x4, fixed_abs, tag = 'smem constant byte address 0x4 - core index']
  #allocation1 [shape = 'u32[144,128]{1,0:T(1,128)}', space=vmem, size = 0x12000, scoped, tag = 'internal scratch']
  %s0 = inlined_call_operand.hbm [shape: f32[1,512], index: 0, kind: input, shape index: {}, may-alias: {0,1}]
  %s1 = inlined_call_operand.hbm [shape: f32[1,512], index: 1, kind: output, shape index: {}, may-alias: {0,1}]
  %s2 = sld [smem:[#allocation0]]
  $region18: #{tpu_custom_call.1} parent=0
    _
  %s4 = ssub.s32 1, %s2
  %s5 = scalar_select 0, %s4, %s2
  $region1: #{tpu_custom_call.1} parent=0
    #allocation2 [shape = 'u8[2048]{0}', space=vmem, size = 0x800, scoped, tag = 'input window, operand 0, single buffered']
    #allocation3 [shape = 's32[1]{0}', space=sflag, size = 0x4, scoped, tag = 'scoped memory for tpu_custom_call.1']
    #allocation4 [shape = 's32[1]{0}', space=sflag, size = 0x4, scoped, tag = 'scoped memory for tpu_custom_call.1']
    #allocation5 [shape = 'u8[2048]{0}', space=vmem, size = 0x800, scoped, tag = 'output window, operand 0, single buffered']
    %6 = vsyncpa [#allocation3], 0
    %7 = vsyncpa [#allocation4], 0
    // Predicated region
    $region2: #{tpu_custom_call.1} parent=1 // pred_check
      _
    $region3: #{tpu_custom_call.1} parent=1 // pred_check_branch
      %9 = sbr.rel (0) target = $region5
    $region4: #{tpu_custom_call.1} parent=1 // pred_region
      %s11 = ssub.s32 64, 64
      %12 = vsyncadd [#allocation3], %s11
      %s14 = sshll.u32 [#allocation2], 4
      %s15 = int_to_ptr.vmem [resolvable:$true] %s14
      %17 = dma.hbm_to_vmem [thread:$0]  %s0, 64, %s15, [#allocation3]
    $region5: #{tpu_custom_call.1} parent=1 // pred_fallthru
      _
    // Predicated region
    $region6: #{tpu_custom_call.1} parent=1 // pred_check
      _
    $region7: #{tpu_custom_call.1} parent=1 // pred_check_branch
      %19 = sbr.rel (0) target = $region9
    $region8: #{tpu_custom_call.1} parent=1 // pred_region
      %20 = dma.done [#allocation3], 64
    $region9: #{tpu_custom_call.1} parent=1 // pred_fallthru
      _
    %v21 = vld [vmem:[#allocation2] sm:$0xf]
    %v22 = vlaneseq
    %vm23 = vcmp.ge.s32.totalorder %v22, 0
    %vm24 = vcmp.lt.s32.totalorder %v22, 512
    %vm25 = vmand %vm23, %vm24
    %26 = vst.msk [vmem:[#allocation5] sm:$0xf] %vm25, %v21
    // Predicated region
    $region10: #{tpu_custom_call.1} parent=1 // pred_check
      _
    $region11: #{tpu_custom_call.1} parent=1 // pred_check_branch
      %28 = sbr.rel (0) target = $region13
    $region12: #{tpu_custom_call.1} parent=1 // pred_region
      %s30 = ssub.s32 64, 64
      %31 = vsyncadd [#allocation4], %s30
      %s33 = sshll.u32 [#allocation5], 4
      %s34 = int_to_ptr.vmem [resolvable:$true] %s33
      %36 = dma.vmem_to_hbm [thread:$0]  %s34, 64, %s1, [#allocation4]
    $region13: #{tpu_custom_call.1} parent=1 // pred_fallthru
      _
    // Predicated region
    $region14: #{tpu_custom_call.1} parent=1 // pred_check
      _
    $region15: #{tpu_custom_call.1} parent=1 // pred_check_branch
      %38 = sbr.rel (0) target = $region17
    $region16: #{tpu_custom_call.1} parent=1 // pred_region
      %39 = dma.done [#allocation4], 64
    $region17: #{tpu_custom_call.1} parent=1 // pred_fallthru
      _
    %40 = vsyncpa [#allocation3], 1
    %41 = vsyncpa [#allocation4], 1

</llo_original>
